<compile_context>
chip_gen: v5e
topology: v5e:2x2
jax: 0.10.0
libtpu: 0.0.40
codegen_flags: <defaults>
</compile_context>

<pallas_src>
import jax
import jax.numpy as jnp
from jax.experimental import pallas as pl
from jax.experimental.pallas import tpu as pltpu


def _sse3d_kernel(bias_ref, x_ref, w_ref, o_ref):
    # bias_ref: SMEM (1,) f32 (scalar prefetch)
    # x_ref:    VMEM (1, C, TS)   w_ref: VMEM (1, C)   o_ref: VMEM (1, C, TS)
    x = x_ref[0]                                            # (C, TS)
    # 1x1x1 conv over channels == (1, C) @ (C, TS) on the MXU, f32 accumulate.
    z = jnp.dot(
        w_ref[...],
        x,
        preferred_element_type=jnp.float32,
        precision=jax.lax.Precision.HIGHEST,
    ) + bias_ref[0]                                         # (1, TS) f32
    gate = jax.nn.sigmoid(z)                                # (1, TS) f32
    o_ref[0] = (x.astype(jnp.float32) * gate).astype(o_ref.dtype)


def _choose_spatial_tile(S, C, itemsize):
    """Largest lane-dense spatial tile whose double-buffered in+out fits ~16 MiB."""
    io_budget = 16 * 1024 * 1024                # 2 buffers x (in + out) tiles
    max_ts = io_budget // (4 * C * itemsize)
    max_ts = max(128, (max_ts // 128) * 128)
    ts = min(max_ts, 8192)                      # amortize ~0.35us per-step overhead
    s_lane = ((S + 127) // 128) * 128           # never bigger than lane-padded S
    return min(ts, s_lane)


def spatial_se_layer_3d(x, weight, bias, *, tile_spatial=None):
    """x: (B, C, D, H, W); weight: (C,) = Conv3d(C, 1, 1) kernel; bias: scalar ()."""
    B, C, D, H, W = x.shape
    S = D * H * W
    itemsize = jnp.dtype(x.dtype).itemsize

    ts = tile_spatial if tile_spatial is not None else _choose_spatial_tile(S, C, itemsize)
    ts = max(128, (int(ts) // 128) * 128)       # keep output tiles lane-dense
    S_pad = pl.cdiv(S, ts) * ts
    n_s = S_pad // ts

    x_flat = x.reshape(B, C, S)
    if S_pad != S:
        # Zero padding is harmless: gated output there is 0 * sigmoid(bias) = 0.
        x_flat = jnp.pad(x_flat, ((0, 0), (0, 0), (0, S_pad - S)))

    w_row = weight.reshape(1, C).astype(x.dtype)            # MXU lhs (1, C)
    b_vec = jnp.asarray(bias, jnp.float32).reshape(1)       # scalar-prefetch -> SMEM

    cost = pl.CostEstimate(
        flops=3 * B * C * S_pad,                # C-MAC reduction + gating multiply
        transcendentals=B * S_pad,              # sigmoid
        bytes_accessed=2 * B * C * S_pad * itemsize,
    )

    out_flat = pl.pallas_call(
        _sse3d_kernel,
        out_shape=jax.ShapeDtypeStruct((B, C, S_pad), x.dtype),
        grid_spec=pltpu.PrefetchScalarGridSpec(
            num_scalar_prefetch=1,              # bias lives in SMEM
            grid=(B, n_s),
            in_specs=[
                pl.BlockSpec((1, C, ts), lambda b, s, bias_ref: (b, 0, s)),  # x tile
                pl.BlockSpec((1, C), lambda b, s, bias_ref: (0, 0)),         # weight
            ],
            out_specs=pl.BlockSpec((1, C, ts), lambda b, s, bias_ref: (b, 0, s)),
        ),
        compiler_params=pltpu.CompilerParams(
            dimension_semantics=("parallel", "parallel"),
            vmem_limit_bytes=32 * 1024 * 1024,
        ),
        cost_estimate=cost,
    )(b_vec, x_flat, w_row)

    if S_pad != S:
        out_flat = out_flat[:, :, :S]
    return out_flat.reshape(B, C, D, H, W)


def _reference(x, weight, bias):
    # plain-JAX reference of the PyTorch forward (f32 conv accumulation)
    z = jnp.einsum(
        "bcdhw,c->bdhw", x, weight, precision=jax.lax.Precision.HIGHEST
    ) + bias                                                 # (B, D, H, W)
    g = jax.nn.sigmoid(z)[:, None, :, :, :]                  # (B, 1, D, H, W)
    return x * g


if __name__ == "__main__":
    key = jax.random.PRNGKey(0)
    kx, kw, kb = jax.random.split(key, 3)

    # S = D*H*W = 288 -> exercises spatial tiling (TS=128 -> 3 tiles) + padding to 384.
    B, C, D, H, W = 2, 8, 4, 8, 9
    x = jax.random.normal(kx, (B, C, D, H, W), dtype=jnp.float32)
    # deterministic Conv3d(C, 1, 1) parameters (synthetic init)
    weight = jax.random.normal(kw, (C,), dtype=jnp.float32) * 0.5
    bias = jax.random.normal(kb, (), dtype=jnp.float32) * 0.1

    out = spatial_se_layer_3d(x, weight, bias, tile_spatial=128)
    jax.block_until_ready(out)

    ref = _reference(x, weight, bias)
    assert out.shape == (B, C, D, H, W)
    max_err = float(jnp.max(jnp.abs(out - ref)))
    assert jnp.allclose(out, ref, atol=1e-4, rtol=1e-4), f"max abs err {max_err}"
    print("KERNEL_OK")
</pallas_src>

<mosaic_0001>
module attributes {stable_mosaic.version = 11 : i64} {
  func.func @_sse3d_kernel(%arg0: i32, %arg1: i32, %arg2: memref<1xf32, #tpu.memory_space<smem>>, %arg3: memref<1x8x128xf32, #tpu.memory_space<vmem>>, %arg4: memref<1x8xf32, #tpu.memory_space<vmem>>, %arg5: memref<1x8x128xf32, #tpu.memory_space<vmem>>) attributes {dimension_semantics = [#tpu.dimension_semantics<parallel>, #tpu.dimension_semantics<parallel>], iteration_bounds = array<i64: 2, 3>, scalar_prefetch = 1 : i64, scratch_operands = 0 : i64, tpu.core_type = #tpu.core_type<tc>, window_params = [{transform_indices = @transform_0, window_bounds = array<i64: 1, 8, 128>}, {pipeline_mode = #tpu.pipeline_mode<synchronous>, transform_indices = @transform_1, window_bounds = array<i64: 1, 8>}, {transform_indices = @transform_2, window_bounds = array<i64: 1, 8, 128>}]} {
    %c0 = arith.constant 0 : index
    %c0_0 = arith.constant 0 : index
    %c0_1 = arith.constant 0 : index
    %0 = vector.load %arg3[%c0, %c0_0, %c0_1] : memref<1x8x128xf32, #tpu.memory_space<vmem>>, vector<1x8x128xf32>
    %1 = vector.shape_cast %0 : vector<1x8x128xf32> to vector<8x128xf32>
    %c0_2 = arith.constant 0 : index
    %c0_3 = arith.constant 0 : index
    %2 = vector.load %arg4[%c0_2, %c0_3] : memref<1x8xf32, #tpu.memory_space<vmem>>, vector<1x8xf32>
    %cst = arith.constant dense<0.000000e+00> : vector<1x128xf32>
    %3 = tpu.matmul %2, %1, %cst {dimension_numbers = #tpu.dot_dimension_numbers<[1], [0], [0], [1], [0, 0, 1, 1], [], []>, precision = #tpu.contract_precision<fp32>} : vector<1x8xf32>, vector<8x128xf32>, vector<1x128xf32> -> vector<1x128xf32>
    %c0_4 = arith.constant 0 : index
    %4 = memref.load %arg2[%c0_4] : memref<1xf32, #tpu.memory_space<smem>>
    %5 = vector.broadcast %4 : f32 to vector<1x128xf32>
    %6 = arith.addf %3, %5 : vector<1x128xf32>
    %7 = arith.negf %6 : vector<1x128xf32>
    %8 = math.exp %7 : vector<1x128xf32>
    %cst_5 = arith.constant 1.000000e+00 : f32
    %9 = vector.broadcast %cst_5 : f32 to vector<1x128xf32>
    %10 = arith.addf %9, %8 : vector<1x128xf32>
    %11 = arith.divf %9, %10 : vector<1x128xf32>
    %12 = vector.broadcast %11 : vector<1x128xf32> to vector<8x128xf32>
    %13 = arith.mulf %1, %12 : vector<8x128xf32>
    %c0_6 = arith.constant 0 : index
    %c0_7 = arith.constant 0 : index
    %c0_8 = arith.constant 0 : index
    %14 = vector.load %arg5[%c0_6, %c0_7, %c0_8] : memref<1x8x128xf32, #tpu.memory_space<vmem>>, vector<1x8x128xf32>
    %15 = vector.shape_cast %14 : vector<1x8x128xf32> to vector<8x128xf32>
    %16 = vector.shape_cast %13 : vector<8x128xf32> to vector<1x8x128xf32>
    tpu.vector_store %arg5[%c0_6, %c0_7, %c0_8], %16 {strides = array<i32>} : memref<1x8x128xf32, #tpu.memory_space<vmem>>, vector<1x8x128xf32>,
    return
  }
  func.func @transform_0(%arg0: i32, %arg1: i32, %arg2: memref<1xf32, #tpu.memory_space<smem>>) -> (i32, i32, i32) {
    %c0_i32 = arith.constant 0 : i32
    %c0_i32_0 = arith.constant 0 : i32
    return %arg0, %c0_i32, %arg1 : i32, i32, i32
  }
  func.func @transform_1(%arg0: i32, %arg1: i32, %arg2: memref<1xf32, #tpu.memory_space<smem>>) -> (i32, i32) {
    %c0_i32 = arith.constant 0 : i32
    %c0_i32_0 = arith.constant 0 : i32
    %c0_i32_1 = arith.constant 0 : i32
    return %c0_i32, %c0_i32_0 : i32, i32
  }
  func.func @transform_2(%arg0: i32, %arg1: i32, %arg2: memref<1xf32, #tpu.memory_space<smem>>) -> (i32, i32, i32) {
    %c0_i32 = arith.constant 0 : i32
    %c0_i32_0 = arith.constant 0 : i32
    return %arg0, %c0_i32, %arg1 : i32, i32, i32
  }
}

</mosaic_0001>

<llo_original>
// kernel: tpu_custom_call.1
$region0: #{tpu_custom_call.1}
  #allocation0 [shape = 'u32[]', space=smem, size = 0x4, offset = 0x4, fixed_abs, tag = 'smem constant byte address 0x4 - core index']
  #allocation1 [shape = 'u32[72,128]{1,0:T(1,128)}', space=vmem, size = 0x9000, scoped, tag = 'internal scratch']
  #allocation2 [shape = 's32[1]{0}', space=sflag, size = 0x4, scoped, tag = 'scoped memory for tpu_custom_call.1']
  #allocation3 [shape = 'f32[1]{0:T(128)S(6)}', space=smem, size = 0x200, scoped, tag = 'prefetched SMEM operand 0']
  %s0 = inlined_call_operand.<no memory space> [shape: f32[1], index: 0, kind: input, shape index: {}]
  %s1 = inlined_call_operand.hbm [shape: f32[2,8,384], index: 1, kind: input, shape index: {}]
  %s2 = inlined_call_operand.vmem [shape: f32[1,8], index: 2, kind: input, shape index: {}]
  %s3 = inlined_call_operand.hbm [shape: f32[2,8,384], index: 3, kind: output, shape index: {}]
  %s4 = sld [smem:[#allocation0]]
  $region45: #{tpu_custom_call.1} parent=0
    _
  %s6 = ssub.s32 1, %s4
  %s7 = scalar_select 0, %s6, %s4
  %8 = sst [smem:[#allocation3]] %s0
  $region1: #{tpu_custom_call.1} parent=0
    #allocation4 [shape = 'u8[8192]{0}', space=vmem, size = 0x2000, scoped, tag = 'input window, operand 1']
    #allocation5 [shape = 's32[2]{0}', space=sflag, size = 0x8, scoped, tag = 'scoped memory for tpu_custom_call.1']
    #allocation6 [shape = 's32[2]{0}', space=sflag, size = 0x8, scoped, tag = 'scoped memory for tpu_custom_call.1']
    #allocation7 [shape = 'u8[8192]{0}', space=vmem, size = 0x2000, scoped, tag = 'output window, operand 0']
    %9 = vsyncpa [#allocation5], 0
    %s10 = scalar_lea.sflag [#allocation5], 1
    %11 = vsyncpa %s10, 0
    %12 = vsyncpa [#allocation6], 0
    %s13 = scalar_lea.sflag [#allocation6], 1
    %14 = vsyncpa %s13, 0
    loop: start=0, step=1, limit=8
    $region2: #{tpu_custom_call.1} parent=1 // loop_pre_header
      _
    $region3: #{tpu_custom_call.1} parent=1 // loop_header
      %s16 = sphi 0, %s20
      %p17 = scmp.ge.s32.totalorder %s16, 8
      %s23 = sphi 0, %s35
      %s24 = sphi 0, %s31
      %s25 = sphi 0, %s23
      %s26 = sphi 0, %s24
      %s27 = sphi 0, %s25
      %s28 = sphi 0, %s26
      %s40 = sphi 0, %s42
      %s43 = sphi 0, %s40
      %s44 = sphi 0, %s43
      %s60 = sphi 0, %s44
      %s64 = sphi 0, %s64
      %s66 = sphi 0, %s64
      %s67 = sphi 0, %s66
      %s81 = sphi 0, %s67
      %s89 = sphi 0, %s91
      %s92 = sphi 0, %s89
      %s93 = sphi 0, %s92
      %s109 = sphi 0, %s93
    $region4: #{tpu_custom_call.1} parent=1 // loop_header_branch
      %19 = sbr.rel (%p17) target = $region8
    $region5: #{tpu_custom_call.1} parent=1 // loop_body
      %s21 = ssub.s32 %s16, 1
      %s22 = ssub.s32 %s16, 2
      %s29 = sadd.s32 1, %s24
      %p30 = scmp.ge.s32.totalorder %s29, 3
      %s31 = scalar_select %p30, 0, %s29
      %s32 = sadd.s32 1, %s23
      %s33 = scalar_select %p30, %s32, %s23
      %p34 = scmp.ge.s32.totalorder %s33, 2
      %s35 = scalar_select %p34, 0, %s33
      %s36 = ssub.s32 %s23, %s35
      %s37 = ssub.s32 %s24, %s31
      %s38 = sor.u32 %s36, %s37
      %p39 = scmp.eq.s32.totalorder %s38, 0
      %s41 = sadd.s32 %s40, 1
      %s42 = scalar_select %p39, %s40, %s41
      %p45 = pneg %p39
      %p46 = scmp.eq.s32.totalorder %s16, 5
      %p47 = por %p45, %p46
      %p48 = scmp.ne.s32.totalorder %s40, %s43
      %p49 = scmp.eq.s32.totalorder %s16, 0
      %p50 = por %p48, %p49
      %p51 = scmp.ne.s32.totalorder %s40, %s43
      %p52 = scmp.eq.s32.totalorder %s21, 5
      %p53 = por %p51, %p52
      %p54 = scmp.ne.s32.totalorder %s43, %s44
      %p55 = scmp.eq.s32.totalorder %s21, 0
      %p56 = por %p54, %p55
      %p57 = scmp.ne.s32.totalorder %s43, %s44
      %p58 = scmp.eq.s32.totalorder %s22, 5
      %p59 = por %p57, %p58
      %p61 = scmp.ne.s32.totalorder %s44, %s60
      %p62 = scmp.eq.s32.totalorder %s22, 0
      %p63 = por %p61, %p62
      %s65 = sadd.s32 %s64, 1
      %p68 = scmp.eq.s32.totalorder %s16, 5
      %p69 = scmp.ne.s32.totalorder %s64, %s66
      %p70 = scmp.eq.s32.totalorder %s16, 0
      %p71 = por %p69, %p70
      %p72 = scmp.ne.s32.totalorder %s64, %s66
      %p73 = scmp.eq.s32.totalorder %s21, 5
      %p74 = por %p72, %p73
      %p75 = scmp.ne.s32.totalorder %s66, %s67
      %p76 = scmp.eq.s32.totalorder %s21, 0
      %p77 = por %p75, %p76
      %p78 = scmp.ne.s32.totalorder %s66, %s67
      %p79 = scmp.eq.s32.totalorder %s22, 5
      %p80 = por %p78, %p79
      %p82 = scmp.ne.s32.totalorder %s67, %s81
      %p83 = scmp.eq.s32.totalorder %s22, 0
      %p84 = por %p82, %p83
      %s85 = ssub.s32 %s23, %s35
      %s86 = ssub.s32 %s24, %s31
      %s87 = sor.u32 %s85, %s86
      %p88 = scmp.eq.s32.totalorder %s87, 0
      %s90 = sadd.s32 %s89, 1
      %s91 = scalar_select %p88, %s89, %s90
      %p94 = pneg %p88
      %p95 = scmp.eq.s32.totalorder %s16, 5
      %p96 = por %p94, %p95
      %p97 = scmp.ne.s32.totalorder %s89, %s92
      %p98 = scmp.eq.s32.totalorder %s16, 0
      %p99 = por %p97, %p98
      %p100 = scmp.ne.s32.totalorder %s89, %s92
      %p101 = scmp.eq.s32.totalorder %s21, 5
      %p102 = por %p100, %p101
      %p103 = scmp.ne.s32.totalorder %s92, %s93
      %p104 = scmp.eq.s32.totalorder %s21, 0
      %p105 = por %p103, %p104
      %p106 = scmp.ne.s32.totalorder %s92, %s93
      %p107 = scmp.eq.s32.totalorder %s22, 5
      %p108 = por %p106, %p107
      %p110 = scmp.ne.s32.totalorder %s93, %s109
      %p111 = scmp.eq.s32.totalorder %s22, 0
      %p112 = por %p110, %p111
      %p113 = scmp.le.s32.totalorder 1, %s16
      %p114 = scmp.lt.s32.totalorder %s16, 7
      %p115 = pnand %p113, %p114
      %p116 = pneg %p115
      // Predicated region
      $region9: #{tpu_custom_call.1} parent=5 // pred_check
        _
      $region10: #{tpu_custom_call.1} parent=5 // pred_check_branch
        %118 = sbr.rel (%p115) target = $region12
      $region11: #{tpu_custom_call.1} parent=5 // pred_region
        %s119 = ssub.s32 %s16, 1
        // Predicated region
        $region13: #{tpu_custom_call.1} parent=11 // pred_check
          %p120 = pneg %p77
        $region14: #{tpu_custom_call.1} parent=11 // pred_check_branch
          %122 = sbr.rel (%p120) target = $region16
        $region15: #{tpu_custom_call.1} parent=11 // pred_region
          _
        $region16: #{tpu_custom_call.1} parent=11 // pred_fallthru
          _
      $region12: #{tpu_custom_call.1} parent=5 // pred_fallthru
        _
      %p123 = scmp.lt.s32.totalorder %s16, 6
      // Predicated region
      $region17: #{tpu_custom_call.1} parent=5 // pred_check
        %p124 = pneg %p123
      $region18: #{tpu_custom_call.1} parent=5 // pred_check_branch
        %126 = sbr.rel (%p124) target = $region20
      $region19: #{tpu_custom_call.1} parent=5 // pred_region
        // Predicated region
        $region21: #{tpu_custom_call.1} parent=19 // pred_check
          %p127 = pneg %p50
        $region22: #{tpu_custom_call.1} parent=19 // pred_check_branch
          %129 = sbr.rel (%p127) target = $region24
        $region23: #{tpu_custom_call.1} parent=19 // pred_region
          %s130 = sand.u32 %s40, 1
          %s131 = scalar_lea.sflag [#allocation5], %s130
          %s132 = sand.u32 %s40, 1
          %s133 = smul.addr %s132, 8
          %s134 = scalar_lea.vmem [#allocation4], %s133
          %136 = vsyncadd %s131, 0
          %s137 = smul.addr %s23, 3
          %s138 = sadd.s32 %s24, %s137
          %s139 = smul.addr %s138, 8
          %s140 = scalar_lea.hbm %s1, %s139
          %s142 = sshll.u32 %s140, 4
          %s143 = int_to_ptr.hbm [resolvable:$true] %s142
          %s144 = sshll.u32 %s134, 4
          %s145 = int_to_ptr.vmem [resolvable:$true] %s144
          %147 = dma.hbm_to_vmem [thread:$0]  %s143, 128, %s145, %s131
        $region24: #{tpu_custom_call.1} parent=19 // pred_fallthru
          _
      $region20: #{tpu_custom_call.1} parent=5 // pred_fallthru
        _
      %p148 = scmp.le.s32.totalorder 1, %s16
      %p149 = scmp.lt.s32.totalorder %s16, 7
      %p150 = pnand %p148, %p149
      %p151 = pneg %p150
      // Predicated region
      $region25: #{tpu_custom_call.1} parent=5 // pred_check
        _
      $region26: #{tpu_custom_call.1} parent=5 // pred_check_branch
        %153 = sbr.rel (%p150) target = $region28
      $region27: #{tpu_custom_call.1} parent=5 // pred_region
        %s154 = ssub.s32 %s16, 1
        %s155 = sand.u32 %s43, 1
        %s156 = scalar_lea.sflag [#allocation5], %s155
        %s157 = sand.u32 %s43, 1
        %s158 = smul.addr %s157, 8
        %s159 = scalar_lea.vmem [#allocation4], %s158
        // Predicated region
        $region29: #{tpu_custom_call.1} parent=27 // pred_check
          %p160 = pneg %p56
        $region30: #{tpu_custom_call.1} parent=27 // pred_check_branch
          %162 = sbr.rel (%p160) target = $region32
        $region31: #{tpu_custom_call.1} parent=27 // pred_region
          %164 = dma.done %s156, 128
        $region32: #{tpu_custom_call.1} parent=27 // pred_fallthru
          _
        %s165 = sand.u32 %s43, 1
        %s166 = scalar_lea.sflag [#allocation5], %s165
        %s167 = sand.u32 %s43, 1
        %s168 = smul.addr %s167, 8
        %s169 = scalar_lea.vmem [#allocation4], %s168
        %p170 = pneg %p56
        %p171 = pneg %p53
        %p172 = pneg %p77
        %p173 = pneg %p74
        %p174 = pneg %p105
        %p175 = pneg %p102
        %s176 = sand.u32 %s92, 1
        %s177 = scalar_lea.sflag [#allocation6], %s176
        %s178 = sand.u32 %s92, 1
        %s179 = smul.addr %s178, 8
        %s180 = scalar_lea.vmem [#allocation7], %s179
        %v181 = vld [vmem:[%s159] sm:$0xff]
        %v182 = vld [vmem:[%s2] sm:$0x1]
        %s183 = sld [smem:[#allocation3]]
        %v184 = vstv %s183
        %vm185 = vcmask 64512
        %v187 = vsel %vm185, %v182, 0
        %189 = vmatpush.msra.mxu0 0.0
        %190 = vmatpush.msra.mxu0 0.0
        %191 = vmatpush.msra.mxu0 0.0
        %192 = vmatpush.msra.mxu0 0.0
        %193 = vmatpush.msra.mxu0 0.0
        %194 = vmatpush.msra.mxu0 0.0
        %195 = vmatpush.msra.mxu0 0.0
        %196 = vmatpush.msra.mxu0 0.0
        %197 = vmatpush.msra.mxu0 0.0
        %198 = vmatpush.msra.mxu0 0.0
        %199 = vmatpush.msra.mxu0 0.0
        %200 = vmatpush.msra.mxu0 0.0
        %201 = vmatpush.msra.mxu0 0.0
        %202 = vmatpush.msra.mxu0 0.0
        %203 = vmatpush.msra.mxu0 0.0
        %v204 = vand.u32 %v181, 4294901760
        %205 = vmatpush.msra.mxu0 %v204
        %v206 = vand.u32 %v187, 4294901760
        %v207 = vsub.f32 %v187, %v206
        %v208 = vand.u32 %v207, 4294901760
        %v209 = vsub.f32 %v207, %v208
        %v210 = vand.u32 %v209, 4294901760
        %211 = vmatmul.f32.gmra.mxu0 %v210
        %v212 = vpop.f32.mrf.mxu0
        %v213 = vadd.f32 %v184, %v212
        %214 = vdwg.mxu0
        %215 = vmatpush.msra.mxu0 0.0
        %216 = vmatpush.msra.mxu0 0.0
        %217 = vmatpush.msra.mxu0 0.0
        %218 = vmatpush.msra.mxu0 0.0
        %219 = vmatpush.msra.mxu0 0.0
        %220 = vmatpush.msra.mxu0 0.0
        %221 = vmatpush.msra.mxu0 0.0
        %222 = vmatpush.msra.mxu0 0.0
        %223 = vmatpush.msra.mxu0 0.0
        %224 = vmatpush.msra.mxu0 0.0
        %225 = vmatpush.msra.mxu0 0.0
        %226 = vmatpush.msra.mxu0 0.0
        %227 = vmatpush.msra.mxu0 0.0
        %228 = vmatpush.msra.mxu0 0.0
        %229 = vmatpush.msra.mxu0 0.0
        %v230 = vand.u32 %v181, 4294901760
        %v231 = vsub.f32 %v181, %v230
        %v232 = vand.u32 %v231, 4294901760
        %v233 = vsub.f32 %v231, %v232
        %v234 = vand.u32 %v233, 4294901760
        %235 = vmatpush.msra.mxu0 %v234
        %v236 = vand.u32 %v187, 4294901760
        %237 = vmatmul.f32.gmra.mxu0 %v236
        %v238 = vpop.f32.mrf.mxu0
        %v239 = vadd.f32 %v213, %v238
        %240 = vdwg.mxu0
        %241 = vmatpush.msra.mxu0 0.0
        %242 = vmatpush.msra.mxu0 0.0
        %243 = vmatpush.msra.mxu0 0.0
        %244 = vmatpush.msra.mxu0 0.0
        %245 = vmatpush.msra.mxu0 0.0
        %246 = vmatpush.msra.mxu0 0.0
        %247 = vmatpush.msra.mxu0 0.0
        %248 = vmatpush.msra.mxu0 0.0
        %249 = vmatpush.msra.mxu0 0.0
        %250 = vmatpush.msra.mxu0 0.0
        %251 = vmatpush.msra.mxu0 0.0
        %252 = vmatpush.msra.mxu0 0.0
        %253 = vmatpush.msra.mxu0 0.0
        %254 = vmatpush.msra.mxu0 0.0
        %255 = vmatpush.msra.mxu0 0.0
        %v256 = vand.u32 %v181, 4294901760
        %v257 = vsub.f32 %v181, %v256
        %258 = vmatpush.msra.mxu0 %v257
        %v259 = vand.u32 %v187, 4294901760
        %v260 = vsub.f32 %v187, %v259
        %261 = vmatmul.f32.gmra.mxu0 %v260
        %v262 = vpop.f32.mrf.mxu0
        %v263 = vadd.f32 %v239, %v262
        %264 = vdwg.mxu0
        %265 = vmatpush.msra.mxu0 0.0
        %266 = vmatpush.msra.mxu0 0.0
        %267 = vmatpush.msra.mxu0 0.0
        %268 = vmatpush.msra.mxu0 0.0
        %269 = vmatpush.msra.mxu0 0.0
        %270 = vmatpush.msra.mxu0 0.0
        %271 = vmatpush.msra.mxu0 0.0
        %272 = vmatpush.msra.mxu0 0.0
        %273 = vmatpush.msra.mxu0 0.0
        %274 = vmatpush.msra.mxu0 0.0
        %275 = vmatpush.msra.mxu0 0.0
        %276 = vmatpush.msra.mxu0 0.0
        %277 = vmatpush.msra.mxu0 0.0
        %278 = vmatpush.msra.mxu0 0.0
        %279 = vmatpush.msra.mxu0 0.0
        %v280 = vand.u32 %v181, 4294901760
        %281 = vmatpush.msra.mxu0 %v280
        %v282 = vand.u32 %v187, 4294901760
        %v283 = vsub.f32 %v187, %v282
        %v284 = vand.u32 %v283, 4294901760
        %285 = vmatmul.f32.gmra.mxu0 %v284
        %v286 = vpop.f32.mrf.mxu0
        %v287 = vadd.f32 %v263, %v286
        %288 = vdwg.mxu0
        %289 = vmatpush.msra.mxu0 0.0
        %290 = vmatpush.msra.mxu0 0.0
        %291 = vmatpush.msra.mxu0 0.0
        %292 = vmatpush.msra.mxu0 0.0
        %293 = vmatpush.msra.mxu0 0.0
        %294 = vmatpush.msra.mxu0 0.0
        %295 = vmatpush.msra.mxu0 0.0
        %296 = vmatpush.msra.mxu0 0.0
        %297 = vmatpush.msra.mxu0 0.0
        %298 = vmatpush.msra.mxu0 0.0
        %299 = vmatpush.msra.mxu0 0.0
        %300 = vmatpush.msra.mxu0 0.0
        %301 = vmatpush.msra.mxu0 0.0
        %302 = vmatpush.msra.mxu0 0.0
        %303 = vmatpush.msra.mxu0 0.0
        %v304 = vand.u32 %v181, 4294901760
        %v305 = vsub.f32 %v181, %v304
        %v306 = vand.u32 %v305, 4294901760
        %307 = vmatpush.msra.mxu0 %v306
        %v308 = vand.u32 %v187, 4294901760
        %309 = vmatmul.f32.gmra.mxu0 %v308
        %v310 = vpop.f32.mrf.mxu0
        %v311 = vadd.f32 %v287, %v310
        %312 = vdwg.mxu0
        %313 = vmatpush.msra.mxu0 0.0
        %314 = vmatpush.msra.mxu0 0.0
        %315 = vmatpush.msra.mxu0 0.0
        %316 = vmatpush.msra.mxu0 0.0
        %317 = vmatpush.msra.mxu0 0.0
        %318 = vmatpush.msra.mxu0 0.0
        %319 = vmatpush.msra.mxu0 0.0
        %320 = vmatpush.msra.mxu0 0.0
        %321 = vmatpush.msra.mxu0 0.0
        %322 = vmatpush.msra.mxu0 0.0
        %323 = vmatpush.msra.mxu0 0.0
        %324 = vmatpush.msra.mxu0 0.0
        %325 = vmatpush.msra.mxu0 0.0
        %326 = vmatpush.msra.mxu0 0.0
        %327 = vmatpush.msra.mxu0 0.0
        %v328 = vand.u32 %v181, 4294901760
        %329 = vmatpush.msra.mxu0 %v328
        %v330 = vand.u32 %v187, 4294901760
        %331 = vmatmul.f32.gmra.mxu0 %v330
        %v332 = vpop.f32.mrf.mxu0
        %v333 = vadd.f32 %v311, %v332
        %334 = vdwg.mxu0
        %v335 = vxor.u32 %v333, 2147483648
        %v336 = vmul.f32 %v335, 1.442695
        %v337 = vpow.pop %v336
        %v338 = vadd.f32 %v337, 1.0
        %v339 = vrcp.pop %v338
        %v340 = vmul.f32 %v338, %v339
        %v341 = vsub.f32 1.0, %v340
        %v342 = vmul.f32 %v339, %v341
        %v343 = vadd.f32 %v339, %v342
        %vm344 = vweird.f32 %v338
        %vm345 = vweird.f32 %v339
        %vm346 = vmor %vm344, %vm345
        %v347 = vsel %vm346, %v339, %v343
        %v348 = vand.u32 2147483647, %v338
        %vm349 = vcmp.eq.f32.partialorder %v348, 8.507059e+37
        %v350 = vand.u32 %v338, 2147483648
        %v351 = vor.u32 1.1754944e-38, %v350
        %v352 = vsel %vm349, %v351, %v347
        %v353 = vmul.f32 1.0, %v352
        %v354 = vperm.slane %v353, 0
        %v355 = vmul.f32 %v181, %v354
        %356 = vst [vmem:[%s180] sm:$0xff] %v355
        %s357 = sand.u32 %s92, 1
        %s358 = scalar_lea.sflag [#allocation6], %s357
        %s359 = sand.u32 %s92, 1
        %s360 = smul.addr %s359, 8
        %s361 = scalar_lea.vmem [#allocation7], %s360
        // Predicated region
        $region33: #{tpu_custom_call.1} parent=27 // pred_check
          %p362 = pneg %p102
        $region34: #{tpu_custom_call.1} parent=27 // pred_check_branch
          %364 = sbr.rel (%p362) target = $region36
        $region35: #{tpu_custom_call.1} parent=27 // pred_region
          %366 = vsyncadd %s358, 0
          %s367 = smul.addr %s25, 3
          %s368 = sadd.s32 %s26, %s367
          %s369 = smul.addr %s368, 8
          %s370 = scalar_lea.hbm %s3, %s369
          %s372 = sshll.u32 %s361, 4
          %s373 = int_to_ptr.vmem [resolvable:$true] %s372
          %s374 = sshll.u32 %s370, 4
          %s375 = int_to_ptr.hbm [resolvable:$true] %s374
          %377 = dma.vmem_to_hbm [thread:$0]  %s373, 128, %s375, %s358
        $region36: #{tpu_custom_call.1} parent=27 // pred_fallthru
          _
      $region28: #{tpu_custom_call.1} parent=5 // pred_fallthru
        _
      %p378 = scmp.le.s32.totalorder 2, %s16
      // Predicated region
      $region37: #{tpu_custom_call.1} parent=5 // pred_check
        %p379 = pneg %p378
      $region38: #{tpu_custom_call.1} parent=5 // pred_check_branch
        %381 = sbr.rel (%p379) target = $region40
      $region39: #{tpu_custom_call.1} parent=5 // pred_region
        %s382 = ssub.s32 %s16, 2
        // Predicated region
        $region41: #{tpu_custom_call.1} parent=39 // pred_check
          %p383 = pneg %p108
        $region42: #{tpu_custom_call.1} parent=39 // pred_check_branch
          %385 = sbr.rel (%p383) target = $region44
        $region43: #{tpu_custom_call.1} parent=39 // pred_region
          %s386 = sand.u32 %s93, 1
          %s387 = scalar_lea.sflag [#allocation6], %s386
          %s388 = sand.u32 %s93, 1
          %s389 = smul.addr %s388, 8
          %s390 = scalar_lea.vmem [#allocation7], %s389
          %392 = dma.done %s387, 128
        $region44: #{tpu_custom_call.1} parent=39 // pred_fallthru
          _
      $region40: #{tpu_custom_call.1} parent=5 // pred_fallthru
        _
    $region6: #{tpu_custom_call.1} parent=1 // loop_footer
      %s20 = sadd.s32 1, %s16
    $region7: #{tpu_custom_call.1} parent=1 // loop_footer_branch
      %15 = sbr.rel target = $region3
    $region8: #{tpu_custom_call.1} parent=1 // loop_exit
      _
    %393 = vsyncpa [#allocation5], 1
    %s394 = scalar_lea.sflag [#allocation5], 1
    %395 = vsyncpa %s394, 1
    %396 = vsyncpa [#allocation6], 1
    %s397 = scalar_lea.sflag [#allocation6], 1
    %398 = vsyncpa %s397, 1

</llo_original>
